<compile_context>
chip_gen: v6e
topology: v6e:2x2x1
jax: 0.10.0
libtpu: 0.0.40
codegen_flags: <defaults>
</compile_context>

<pallas_src>
import functools

import jax
import jax.numpy as jnp
from jax.experimental import pallas as pl
from jax.experimental.pallas import tpu as pltpu


def _make_divisible(ch, divisor=8, min_ch=None):
    if min_ch is None:
        min_ch = divisor
    new_ch = max(min_ch, int(ch + divisor / 2) // divisor * divisor)
    if new_ch < 0.9 * ch:
        new_ch += divisor
    return new_ch


def _vmem_limit_bytes():
    """~48 MiB on 64-MiB-VMEM parts (v7x), 64 MiB on 128-MiB parts (v5e/v6e)."""
    try:
        cap = pltpu.get_tpu_info().vmem_capacity_bytes
    except Exception:
        cap = 64 * 1024 * 1024
    return int(min(cap - 16 * 1024 * 1024, 64 * 1024 * 1024))


# Largest per-batch (C, HW) slab the fused single-pass kernel keeps resident in
# VMEM.  MobileNetV3 SE layers are <= ~1.2 MiB so they always take the fused
# path; bigger inputs fall back to the two-pass version below.
_FUSED_SLAB_BYTES = 4 * 1024 * 1024


# ----------------------------- fused single pass -----------------------------
def _se_fused_kernel(x_ref, w1t_ref, b1_ref, w2_ref, b2_ref, o_ref, *, inv_hw):
    # x_ref block: (1, C, HW); weights are tiny full-array VMEM blocks.
    x = x_ref[0]                                                        # (C, HW)
    # Global average pool with f32 accumulation, divided by the true H*W.
    pooled = jnp.sum(x.astype(jnp.float32), axis=1, keepdims=True) * inv_hw  # (C, 1)
    # fc1 (1x1 conv) + ReLU on the VPU: (C, S) * (C, 1) -> reduce over C (sublanes).
    h = jnp.sum(w1t_ref[...] * pooled, axis=0, keepdims=True) + b1_ref[...]  # (1, S)
    h = jnp.maximum(h, 0.0)
    # fc2 (1x1 conv): (C, S) * (1, S) -> reduce over S (lanes).
    z = jnp.sum(w2_ref[...] * h, axis=1, keepdims=True) + b2_ref[...]        # (C, 1)
    # hardsigmoid, then scale in the input dtype (keeps bf16 paths bf16).
    scale = jnp.clip((z + 3.0) * (1.0 / 6.0), 0.0, 1.0)                      # (C, 1)
    o_ref[0] = (scale.astype(x.dtype) * x).astype(o_ref.dtype)


def _fused_se(x_flat, w1, b1, w2, b2, vmem_limit):
    N, C, HW = x_flat.shape
    S = w1.shape[0]
    itemsize = jnp.dtype(x_flat.dtype).itemsize
    # TODO(synk): for v7x at N==1 split the HW axis onto a second "parallel"
    # grid axis (redundant scale compute per half) so both TensorCores are used.
    return pl.pallas_call(
        functools.partial(_se_fused_kernel, inv_hw=1.0 / HW),
        out_shape=jax.ShapeDtypeStruct((N, C, HW), x_flat.dtype),
        grid_spec=pltpu.PrefetchScalarGridSpec(
            num_scalar_prefetch=0,
            grid=(N,),
            in_specs=[
                pl.BlockSpec((1, C, HW), lambda n: (n, 0, 0)),
                pl.BlockSpec((C, S), lambda n: (0, 0)),   # w1.T
                pl.BlockSpec((1, S), lambda n: (0, 0)),   # b1 row
                pl.BlockSpec((C, S), lambda n: (0, 0)),   # w2
                pl.BlockSpec((C, 1), lambda n: (0, 0)),   # b2 column
            ],
            out_specs=pl.BlockSpec((1, C, HW), lambda n: (n, 0, 0)),
        ),
        compiler_params=pltpu.CompilerParams(
            dimension_semantics=("parallel",),
            vmem_limit_bytes=vmem_limit),
        cost_estimate=pl.CostEstimate(
            flops=2 * N * C * HW + 4 * N * C * S,
            transcendentals=0,
            bytes_accessed=2 * N * C * HW * itemsize + 2 * C * S * 4),
    )(x_flat, w1.T, b1.reshape(1, S), w2, b2.reshape(C, 1))


# --------------------- two-pass fallback (very large slabs) -------------------
def _choose_hw_tile(C, HW, itemsize, target_bytes):
    """Lane-dense (multiple-of-128) HW tile sized for ~target_bytes per block."""
    max_lanes = max(128, (target_bytes // max(1, C * itemsize)) // 128 * 128)
    hw_rounded = pl.cdiv(HW, 128) * 128
    return min(max_lanes, hw_rounded)


def _pool_sum_kernel(x_ref, o_ref, *, hw, hw_tile):
    # x_ref: (1, C, hw_tile); o_ref: (1, C, 1) accumulator resident across the
    # (last, "arbitrary") tile axis.  The tail tile is masked in-kernel instead
    # of padding x in HBM (OOB-read block contents are unspecified).
    t = pl.program_id(1)

    @pl.when(t == 0)
    def _():
        o_ref[...] = jnp.zeros_like(o_ref)

    xf = x_ref[...].astype(jnp.float32)
    lane = jax.lax.broadcasted_iota(jnp.int32, xf.shape, 2)
    xf = jnp.where(t * hw_tile + lane < hw, xf, 0.0)
    o_ref[...] += jnp.sum(xf, axis=2, keepdims=True)


def _scale_kernel(s_ref, x_ref, o_ref):
    # OOB lanes of the tail tile compute garbage, but their stores are dropped.
    o_ref[...] = (s_ref[...] * x_ref[...]).astype(o_ref.dtype)


def _two_pass_se(x_flat, w1, b1, w2, b2, vmem_limit,
                 target_tile_bytes=2 * 1024 * 1024):
    N, C, HW = x_flat.shape
    S = w1.shape[0]
    itemsize = jnp.dtype(x_flat.dtype).itemsize
    hw_tile = _choose_hw_tile(C, HW, itemsize, target_tile_bytes)
    n_tiles = pl.cdiv(HW, hw_tile)

    # --- Pass 1: pooled sums (N, C, 1), f32 accumulation ---------------------
    pool_sums = pl.pallas_call(
        functools.partial(_pool_sum_kernel, hw=HW, hw_tile=hw_tile),
        out_shape=jax.ShapeDtypeStruct((N, C, 1), jnp.float32),
        grid_spec=pltpu.PrefetchScalarGridSpec(
            num_scalar_prefetch=0,
            grid=(N, n_tiles),
            in_specs=[pl.BlockSpec((1, C, hw_tile), lambda n, t: (n, 0, t))],
            out_specs=pl.BlockSpec((1, C, 1), lambda n, t: (n, 0, 0)),
        ),
        compiler_params=pltpu.CompilerParams(
            dimension_semantics=("parallel", "arbitrary"),
            vmem_limit_bytes=vmem_limit),
    )(x_flat)

    # --- Tiny FCs batched across N in plain XLA (negligible FLOPs) -----------
    pooled = pool_sums[:, :, 0] * (1.0 / HW)                  # true mean
    h = jnp.maximum(pooled @ w1.T + b1.reshape(1, S), 0.0)
    z = h @ w2.T + b2.reshape(1, C)
    scale = jnp.clip((z + 3.0) / 6.0, 0.0, 1.0)
    scale = scale.reshape(N, C, 1).astype(x_flat.dtype)

    # --- Pass 2: scale * x on lane-dense tiles, fully parallel grid ----------
    return pl.pallas_call(
        _scale_kernel,
        out_shape=jax.ShapeDtypeStruct((N, C, HW), x_flat.dtype),
        grid_spec=pltpu.PrefetchScalarGridSpec(
            num_scalar_prefetch=0,
            grid=(N, n_tiles),
            in_specs=[
                pl.BlockSpec((1, C, 1), lambda n, t: (n, 0, 0)),
                pl.BlockSpec((1, C, hw_tile), lambda n, t: (n, 0, t)),
            ],
            out_specs=pl.BlockSpec((1, C, hw_tile), lambda n, t: (n, 0, t)),
        ),
        compiler_params=pltpu.CompilerParams(
            dimension_semantics=("parallel", "parallel"),
            vmem_limit_bytes=vmem_limit),
    )(scale, x_flat)


# ----------------------------------- wrapper ----------------------------------
def squeeze_excitation(x, w1, b1, w2, b2):
    """x: (N, C, H, W).  w1: (S, C), b1: (S, 1), w2: (C, S), b2: (C, 1)."""
    N, C, H, W = x.shape
    HW = H * W
    x_flat = x.reshape(N, C, HW)
    vmem_limit = _vmem_limit_bytes()
    slab_bytes = C * HW * jnp.dtype(x.dtype).itemsize

    if slab_bytes <= _FUSED_SLAB_BYTES:
        out_flat = _fused_se(x_flat, w1, b1, w2, b2, vmem_limit)
    else:
        out_flat = _two_pass_se(x_flat, w1, b1, w2, b2, vmem_limit)
    return out_flat.reshape(N, C, H, W)


squeeze_excitation_jit = jax.jit(squeeze_excitation)


# --------------------------------- reference ----------------------------------
def reference_se(x, w1, b1, w2, b2):
    pooled = jnp.mean(x, axis=(2, 3), keepdims=True)                   # (N,C,1,1)
    h = jnp.einsum('sc,ncij->nsij', w1, pooled) + b1[None, :, :, None]
    h = jnp.maximum(h, 0.0)
    s = jnp.einsum('cs,nsij->ncij', w2, h) + b2[None, :, :, None]
    s = jnp.clip((s + 3.0) / 6.0, 0.0, 1.0)
    return s * x


def _make_inputs(key, N, C, H, W, squeeze_factor=4):
    S = _make_divisible(C // squeeze_factor, 8)
    k_x, k_w1, k_b1, k_w2, k_b2 = jax.random.split(key, 5)
    x = jax.random.normal(k_x, (N, C, H, W), dtype=jnp.float32)
    w1 = jax.random.normal(k_w1, (S, C), dtype=jnp.float32) * 0.1
    b1 = jax.random.normal(k_b1, (S, 1), dtype=jnp.float32) * 0.1
    w2 = jax.random.normal(k_w2, (C, S), dtype=jnp.float32) * 0.1
    b2 = jax.random.normal(k_b2, (C, 1), dtype=jnp.float32) * 0.1
    return x, w1, b1, w2, b2


def _run_case(key, N, C, H, W):
    x, w1, b1, w2, b2 = _make_inputs(key, N, C, H, W)
    out = squeeze_excitation_jit(x, w1, b1, w2, b2)
    jax.block_until_ready(out)
    ref = reference_se(x, w1, b1, w2, b2)
    assert jnp.allclose(out, ref, atol=1e-5, rtol=1e-5), (
        f"fused mismatch vs reference for shape {(N, C, H, W)}")


def _run_two_pass_case(key, N, C, H, W):
    # Exercise the large-slab fallback with tiny tiles so the multi-tile
    # accumulator and the masked tail tile actually run.
    x, w1, b1, w2, b2 = _make_inputs(key, N, C, H, W)

    @jax.jit
    def f(x, w1, b1, w2, b2):
        out = _two_pass_se(x.reshape(N, C, H * W), w1, b1, w2, b2,
                           48 * 1024 * 1024, target_tile_bytes=4096)
        return out.reshape(N, C, H, W)

    out = f(x, w1, b1, w2, b2)
    jax.block_until_ready(out)
    ref = reference_se(x, w1, b1, w2, b2)
    assert jnp.allclose(out, ref, atol=1e-5, rtol=1e-5), (
        f"two-pass mismatch vs reference for shape {(N, C, H, W)}")


if __name__ == "__main__":
    key = jax.random.PRNGKey(0)
    k1, k2, k3 = jax.random.split(key, 3)

    # Fused single-pass path, HW a multiple of 128.
    _run_case(k1, N=2, C=4, H=16, W=16)
    # Fused path with HW = 49 (no padding / slicing anywhere).
    _run_case(k2, N=2, C=4, H=7, W=7)
    # Two-pass fallback: HW = 529 with 256-lane tiles -> accumulator + masked tail.
    _run_two_pass_case(k3, N=2, C=4, H=23, W=23)

    print("KERNEL_OK")
</pallas_src>

<mosaic_0001>
module attributes {stable_mosaic.version = 11 : i64} {
  func.func @_se_fused_kernel(%arg0: i32, %arg1: memref<1x4x256xf32, #tpu.memory_space<vmem>>, %arg2: memref<4x8xf32, #tpu.memory_space<vmem>>, %arg3: memref<1x8xf32, #tpu.memory_space<vmem>>, %arg4: memref<4x8xf32, #tpu.memory_space<vmem>>, %arg5: memref<4x1xf32, #tpu.memory_space<vmem>>, %arg6: memref<1x4x256xf32, #tpu.memory_space<vmem>>) attributes {dimension_semantics = [#tpu.dimension_semantics<parallel>], iteration_bounds = array<i64: 2>, scalar_prefetch = 0 : i64, scratch_operands = 0 : i64, tpu.core_type = #tpu.core_type<tc>, window_params = [{transform_indices = @transform_0, window_bounds = array<i64: 1, 4, 256>}, {pipeline_mode = #tpu.pipeline_mode<synchronous>, transform_indices = @transform_1, window_bounds = array<i64: 4, 8>}, {pipeline_mode = #tpu.pipeline_mode<synchronous>, transform_indices = @transform_2, window_bounds = array<i64: 1, 8>}, {pipeline_mode = #tpu.pipeline_mode<synchronous>, transform_indices = @transform_3, window_bounds = array<i64: 4, 8>}, {pipeline_mode = #tpu.pipeline_mode<synchronous>, transform_indices = @transform_4, window_bounds = array<i64: 4, 1>}, {transform_indices = @transform_5, window_bounds = array<i64: 1, 4, 256>}]} {
    %c0 = arith.constant 0 : index
    %c0_0 = arith.constant 0 : index
    %c0_1 = arith.constant 0 : index
    %0 = vector.load %arg1[%c0, %c0_0, %c0_1] : memref<1x4x256xf32, #tpu.memory_space<vmem>>, vector<1x4x256xf32>
    %1 = vector.shape_cast %0 : vector<1x4x256xf32> to vector<4x256xf32>
    %cst = arith.constant dense<0.000000e+00> : vector<4xf32>
    %2 = vector.multi_reduction <add>, %1, %cst [1] : vector<4x256xf32> to vector<4xf32>
    %3 = vector.shape_cast %2 : vector<4xf32> to vector<4x1xf32>
    %cst_2 = arith.constant 3.906250e-03 : f32
    %4 = vector.broadcast %cst_2 : f32 to vector<4x1xf32>
    %5 = arith.mulf %3, %4 : vector<4x1xf32>
    %c0_3 = arith.constant 0 : index
    %c0_4 = arith.constant 0 : index
    %6 = vector.load %arg2[%c0_3, %c0_4] : memref<4x8xf32, #tpu.memory_space<vmem>>, vector<4x8xf32>
    %7 = vector.broadcast %5 : vector<4x1xf32> to vector<4x8xf32>
    %8 = arith.mulf %6, %7 : vector<4x8xf32>
    %cst_5 = arith.constant dense<0.000000e+00> : vector<8xf32>
    %9 = vector.multi_reduction <add>, %8, %cst_5 [0] : vector<4x8xf32> to vector<8xf32>
    %10 = vector.shape_cast %9 : vector<8xf32> to vector<1x8xf32>
    %c0_6 = arith.constant 0 : index
    %c0_7 = arith.constant 0 : index
    %11 = vector.load %arg3[%c0_6, %c0_7] : memref<1x8xf32, #tpu.memory_space<vmem>>, vector<1x8xf32>
    %12 = arith.addf %10, %11 : vector<1x8xf32>
    %cst_8 = arith.constant 0.000000e+00 : f32
    %13 = vector.broadcast %cst_8 : f32 to vector<1x8xf32>
    %14 = arith.maximumf %12, %13 : vector<1x8xf32>
    %c0_9 = arith.constant 0 : index
    %c0_10 = arith.constant 0 : index
    %15 = vector.load %arg4[%c0_9, %c0_10] : memref<4x8xf32, #tpu.memory_space<vmem>>, vector<4x8xf32>
    %16 = vector.broadcast %14 : vector<1x8xf32> to vector<4x8xf32>
    %17 = arith.mulf %15, %16 : vector<4x8xf32>
    %cst_11 = arith.constant dense<0.000000e+00> : vector<4xf32>
    %18 = vector.multi_reduction <add>, %17, %cst_11 [1] : vector<4x8xf32> to vector<4xf32>
    %19 = vector.shape_cast %18 : vector<4xf32> to vector<4x1xf32>
    %c0_12 = arith.constant 0 : index
    %c0_13 = arith.constant 0 : index
    %20 = vector.load %arg5[%c0_12, %c0_13] : memref<4x1xf32, #tpu.memory_space<vmem>>, vector<4x1xf32>
    %21 = arith.addf %19, %20 : vector<4x1xf32>
    %cst_14 = arith.constant 3.000000e+00 : f32
    %22 = vector.broadcast %cst_14 : f32 to vector<4x1xf32>
    %23 = arith.addf %21, %22 : vector<4x1xf32>
    %cst_15 = arith.constant 0.166666672 : f32
    %24 = vector.broadcast %cst_15 : f32 to vector<4x1xf32>
    %25 = arith.mulf %23, %24 : vector<4x1xf32>
    %cst_16 = arith.constant 0.000000e+00 : f32
    %cst_17 = arith.constant 1.000000e+00 : f32
    %26 = vector.broadcast %cst_16 : f32 to vector<4x1xf32>
    %27 = arith.maximumf %26, %25 : vector<4x1xf32>
    %28 = vector.broadcast %cst_17 : f32 to vector<4x1xf32>
    %29 = arith.minimumf %28, %27 : vector<4x1xf32>
    %30 = vector.broadcast %29 : vector<4x1xf32> to vector<4x256xf32>
    %31 = arith.mulf %30, %1 : vector<4x256xf32>
    %c0_18 = arith.constant 0 : index
    %c0_19 = arith.constant 0 : index
    %c0_20 = arith.constant 0 : index
    %32 = vector.load %arg6[%c0_18, %c0_19, %c0_20] : memref<1x4x256xf32, #tpu.memory_space<vmem>>, vector<1x4x256xf32>
    %33 = vector.shape_cast %32 : vector<1x4x256xf32> to vector<4x256xf32>
    %34 = vector.shape_cast %31 : vector<4x256xf32> to vector<1x4x256xf32>
    tpu.vector_store %arg6[%c0_18, %c0_19, %c0_20], %34 {strides = array<i32>} : memref<1x4x256xf32, #tpu.memory_space<vmem>>, vector<1x4x256xf32>,
    return
  }
  func.func @transform_0(%arg0: i32) -> (i32, i32, i32) {
    %c0_i32 = arith.constant 0 : i32
    %c0_i32_0 = arith.constant 0 : i32
    %c0_i32_1 = arith.constant 0 : i32
    return %arg0, %c0_i32, %c0_i32_0 : i32, i32, i32
  }
  func.func @transform_1(%arg0: i32) -> (i32, i32) {
    %c0_i32 = arith.constant 0 : i32
    %c0_i32_0 = arith.constant 0 : i32
    %c0_i32_1 = arith.constant 0 : i32
    return %c0_i32, %c0_i32_0 : i32, i32
  }
  func.func @transform_2(%arg0: i32) -> (i32, i32) {
    %c0_i32 = arith.constant 0 : i32
    %c0_i32_0 = arith.constant 0 : i32
    %c0_i32_1 = arith.constant 0 : i32
    return %c0_i32, %c0_i32_0 : i32, i32
  }
  func.func @transform_3(%arg0: i32) -> (i32, i32) {
    %c0_i32 = arith.constant 0 : i32
    %c0_i32_0 = arith.constant 0 : i32
    %c0_i32_1 = arith.constant 0 : i32
    return %c0_i32, %c0_i32_0 : i32, i32
  }
  func.func @transform_4(%arg0: i32) -> (i32, i32) {
    %c0_i32 = arith.constant 0 : i32
    %c0_i32_0 = arith.constant 0 : i32
    %c0_i32_1 = arith.constant 0 : i32
    return %c0_i32, %c0_i32_0 : i32, i32
  }
  func.func @transform_5(%arg0: i32) -> (i32, i32, i32) {
    %c0_i32 = arith.constant 0 : i32
    %c0_i32_0 = arith.constant 0 : i32
    %c0_i32_1 = arith.constant 0 : i32
    return %arg0, %c0_i32, %c0_i32_0 : i32, i32, i32
  }
}

</mosaic_0001>

<llo_original>
// kernel: squeeze_excitation.1
$region0: #{squeeze_excitation.1}
  #allocation0 [shape = 'u32[]', space=smem, size = 0x4, offset = 0x4, fixed_abs, tag = 'smem constant byte address 0x4 - core index']
  #allocation1 [shape = 'u32[144,128]{1,0:T(1,128)}', space=vmem, size = 0x12000, scoped, tag = 'internal scratch']
  %s0 = inlined_call_operand.vmem [shape: f32[2,4,256], index: 0, kind: input, shape index: {}]
  %s1 = inlined_call_operand.vmem [shape: f32[4,8], index: 1, kind: input, shape index: {}]
  %s2 = inlined_call_operand.vmem [shape: f32[1,8], index: 2, kind: input, shape index: {}]
  %s3 = inlined_call_operand.vmem [shape: f32[4,8], index: 3, kind: input, shape index: {}]
  %s4 = inlined_call_operand.vmem [shape: f32[4,1], index: 4, kind: input, shape index: {}]
  %s5 = inlined_call_operand.vmem [shape: f32[2,4,256], index: 5, kind: output, shape index: {}]
  %s6 = sld [smem:[#allocation0]]
  $region53: #{squeeze_excitation.1} parent=0
    _
  %s8 = ssub.s32 1, %s6
  %s9 = scalar_select 0, %s8, %s6
  loop: start=0, step=1, limit=4
  $region2: #{squeeze_excitation.1} parent=0 // loop_pre_header
    _
  $region3: #{squeeze_excitation.1} parent=0 // loop_header
    %s11 = sphi 0, %s15
    %p12 = scmp.ge.s32.totalorder %s11, 4
    %s21 = sphi 0, %s23
    %s24 = sphi 0, %s21
    %s25 = sphi 0, %s24
    %s41 = sphi 0, %s25
    %s45 = sphi 0, %s45
    %s47 = sphi 0, %s45
    %s48 = sphi 0, %s47
    %s62 = sphi 0, %s48
    %s66 = sphi 0, %s66
    %s68 = sphi 0, %s66
    %s69 = sphi 0, %s68
    %s83 = sphi 0, %s69
    %s87 = sphi 0, %s87
    %s89 = sphi 0, %s87
    %s90 = sphi 0, %s89
    %s104 = sphi 0, %s90
    %s108 = sphi 0, %s108
    %s110 = sphi 0, %s108
    %s111 = sphi 0, %s110
    %s125 = sphi 0, %s111
    %s131 = sphi 0, %s133
    %s134 = sphi 0, %s131
    %s135 = sphi 0, %s134
    %s151 = sphi 0, %s135
  $region4: #{squeeze_excitation.1} parent=0 // loop_header_branch
    %14 = sbr.rel (%p12) target = $region8
  $region5: #{squeeze_excitation.1} parent=0 // loop_body
    %s16 = ssub.s32 %s11, 1
    %s17 = ssub.s32 %s11, 2
    %s18 = sadd.s32 %s11, 1
    %s19 = ssub.s32 %s11, %s18
    %p20 = scmp.eq.s32.totalorder %s19, 0
    %s22 = sadd.s32 %s21, 1
    %s23 = scalar_select %p20, %s21, %s22
    %p26 = pneg %p20
    %p27 = scmp.eq.s32.totalorder %s11, 1
    %p28 = por %p26, %p27
    %p29 = scmp.ne.s32.totalorder %s21, %s24
    %p30 = scmp.eq.s32.totalorder %s11, 0
    %p31 = por %p29, %p30
    %p32 = scmp.ne.s32.totalorder %s21, %s24
    %p33 = scmp.eq.s32.totalorder %s16, 1
    %p34 = por %p32, %p33
    %p35 = scmp.ne.s32.totalorder %s24, %s25
    %p36 = scmp.eq.s32.totalorder %s16, 0
    %p37 = por %p35, %p36
    %p38 = scmp.ne.s32.totalorder %s24, %s25
    %p39 = scmp.eq.s32.totalorder %s17, 1
    %p40 = por %p38, %p39
    %p42 = scmp.ne.s32.totalorder %s25, %s41
    %p43 = scmp.eq.s32.totalorder %s17, 0
    %p44 = por %p42, %p43
    %s46 = sadd.s32 %s45, 1
    %p49 = scmp.eq.s32.totalorder %s11, 1
    %p50 = scmp.ne.s32.totalorder %s45, %s47
    %p51 = scmp.eq.s32.totalorder %s11, 0
    %p52 = por %p50, %p51
    %p53 = scmp.ne.s32.totalorder %s45, %s47
    %p54 = scmp.eq.s32.totalorder %s16, 1
    %p55 = por %p53, %p54
    %p56 = scmp.ne.s32.totalorder %s47, %s48
    %p57 = scmp.eq.s32.totalorder %s16, 0
    %p58 = por %p56, %p57
    %p59 = scmp.ne.s32.totalorder %s47, %s48
    %p60 = scmp.eq.s32.totalorder %s17, 1
    %p61 = por %p59, %p60
    %p63 = scmp.ne.s32.totalorder %s48, %s62
    %p64 = scmp.eq.s32.totalorder %s17, 0
    %p65 = por %p63, %p64
    %s67 = sadd.s32 %s66, 1
    %p70 = scmp.eq.s32.totalorder %s11, 1
    %p71 = scmp.ne.s32.totalorder %s66, %s68
    %p72 = scmp.eq.s32.totalorder %s11, 0
    %p73 = por %p71, %p72
    %p74 = scmp.ne.s32.totalorder %s66, %s68
    %p75 = scmp.eq.s32.totalorder %s16, 1
    %p76 = por %p74, %p75
    %p77 = scmp.ne.s32.totalorder %s68, %s69
    %p78 = scmp.eq.s32.totalorder %s16, 0
    %p79 = por %p77, %p78
    %p80 = scmp.ne.s32.totalorder %s68, %s69
    %p81 = scmp.eq.s32.totalorder %s17, 1
    %p82 = por %p80, %p81
    %p84 = scmp.ne.s32.totalorder %s69, %s83
    %p85 = scmp.eq.s32.totalorder %s17, 0
    %p86 = por %p84, %p85
    %s88 = sadd.s32 %s87, 1
    %p91 = scmp.eq.s32.totalorder %s11, 1
    %p92 = scmp.ne.s32.totalorder %s87, %s89
    %p93 = scmp.eq.s32.totalorder %s11, 0
    %p94 = por %p92, %p93
    %p95 = scmp.ne.s32.totalorder %s87, %s89
    %p96 = scmp.eq.s32.totalorder %s16, 1
    %p97 = por %p95, %p96
    %p98 = scmp.ne.s32.totalorder %s89, %s90
    %p99 = scmp.eq.s32.totalorder %s16, 0
    %p100 = por %p98, %p99
    %p101 = scmp.ne.s32.totalorder %s89, %s90
    %p102 = scmp.eq.s32.totalorder %s17, 1
    %p103 = por %p101, %p102
    %p105 = scmp.ne.s32.totalorder %s90, %s104
    %p106 = scmp.eq.s32.totalorder %s17, 0
    %p107 = por %p105, %p106
    %s109 = sadd.s32 %s108, 1
    %p112 = scmp.eq.s32.totalorder %s11, 1
    %p113 = scmp.ne.s32.totalorder %s108, %s110
    %p114 = scmp.eq.s32.totalorder %s11, 0
    %p115 = por %p113, %p114
    %p116 = scmp.ne.s32.totalorder %s108, %s110
    %p117 = scmp.eq.s32.totalorder %s16, 1
    %p118 = por %p116, %p117
    %p119 = scmp.ne.s32.totalorder %s110, %s111
    %p120 = scmp.eq.s32.totalorder %s16, 0
    %p121 = por %p119, %p120
    %p122 = scmp.ne.s32.totalorder %s110, %s111
    %p123 = scmp.eq.s32.totalorder %s17, 1
    %p124 = por %p122, %p123
    %p126 = scmp.ne.s32.totalorder %s111, %s125
    %p127 = scmp.eq.s32.totalorder %s17, 0
    %p128 = por %p126, %p127
    %s129 = ssub.s32 %s11, %s18
    %p130 = scmp.eq.s32.totalorder %s129, 0
    %s132 = sadd.s32 %s131, 1
    %s133 = scalar_select %p130, %s131, %s132
    %p136 = pneg %p130
    %p137 = scmp.eq.s32.totalorder %s11, 1
    %p138 = por %p136, %p137
    %p139 = scmp.ne.s32.totalorder %s131, %s134
    %p140 = scmp.eq.s32.totalorder %s11, 0
    %p141 = por %p139, %p140
    %p142 = scmp.ne.s32.totalorder %s131, %s134
    %p143 = scmp.eq.s32.totalorder %s16, 1
    %p144 = por %p142, %p143
    %p145 = scmp.ne.s32.totalorder %s134, %s135
    %p146 = scmp.eq.s32.totalorder %s16, 0
    %p147 = por %p145, %p146
    %p148 = scmp.ne.s32.totalorder %s134, %s135
    %p149 = scmp.eq.s32.totalorder %s17, 1
    %p150 = por %p148, %p149
    %p152 = scmp.ne.s32.totalorder %s135, %s151
    %p153 = scmp.eq.s32.totalorder %s17, 0
    %p154 = por %p152, %p153
    %p155 = scmp.le.s32.totalorder 1, %s11
    %p156 = scmp.lt.s32.totalorder %s11, 3
    %p157 = pnand %p155, %p156
    %p158 = pneg %p157
    // Predicated region
    $region9: #{squeeze_excitation.1} parent=5 // pred_check
      _
    $region10: #{squeeze_excitation.1} parent=5 // pred_check_branch
      %160 = sbr.rel (%p157) target = $region12
    $region11: #{squeeze_excitation.1} parent=5 // pred_region
      %s161 = ssub.s32 %s11, 1
      // Predicated region
      $region13: #{squeeze_excitation.1} parent=11 // pred_check
        %p162 = pneg %p58
      $region14: #{squeeze_excitation.1} parent=11 // pred_check_branch
        %164 = sbr.rel (%p162) target = $region16
      $region15: #{squeeze_excitation.1} parent=11 // pred_region
        _
      $region16: #{squeeze_excitation.1} parent=11 // pred_fallthru
        _
      // Predicated region
      $region17: #{squeeze_excitation.1} parent=11 // pred_check
        %p165 = pneg %p79
      $region18: #{squeeze_excitation.1} parent=11 // pred_check_branch
        %167 = sbr.rel (%p165) target = $region20
      $region19: #{squeeze_excitation.1} parent=11 // pred_region
        _
      $region20: #{squeeze_excitation.1} parent=11 // pred_fallthru
        _
      // Predicated region
      $region21: #{squeeze_excitation.1} parent=11 // pred_check
        %p168 = pneg %p100
      $region22: #{squeeze_excitation.1} parent=11 // pred_check_branch
        %170 = sbr.rel (%p168) target = $region24
      $region23: #{squeeze_excitation.1} parent=11 // pred_region
        _
      $region24: #{squeeze_excitation.1} parent=11 // pred_fallthru
        _
      // Predicated region
      $region25: #{squeeze_excitation.1} parent=11 // pred_check
        %p171 = pneg %p121
      $region26: #{squeeze_excitation.1} parent=11 // pred_check_branch
        %173 = sbr.rel (%p171) target = $region28
      $region27: #{squeeze_excitation.1} parent=11 // pred_region
        _
      $region28: #{squeeze_excitation.1} parent=11 // pred_fallthru
        _
    $region12: #{squeeze_excitation.1} parent=5 // pred_fallthru
      _
    %p174 = scmp.lt.s32.totalorder %s11, 2
    // Predicated region
    $region29: #{squeeze_excitation.1} parent=5 // pred_check
      %p175 = pneg %p174
    $region30: #{squeeze_excitation.1} parent=5 // pred_check_branch
      %177 = sbr.rel (%p175) target = $region32
    $region31: #{squeeze_excitation.1} parent=5 // pred_region
      // Predicated region
      $region33: #{squeeze_excitation.1} parent=31 // pred_check
        %p178 = pneg %p31
      $region34: #{squeeze_excitation.1} parent=31 // pred_check_branch
        %180 = sbr.rel (%p178) target = $region36
      $region35: #{squeeze_excitation.1} parent=31 // pred_region
        %p181 = scmp.lt.s32.totalorder %s11, 1
        %s182 = scalar_select %p181, %s11, 1
        %s183 = smul.addr %s182, 2
        %s184 = smul.addr %s183, 4
        %s185 = scalar_lea.vmem %s0, %s184
      $region36: #{squeeze_excitation.1} parent=31 // pred_fallthru
        _
    $region32: #{squeeze_excitation.1} parent=5 // pred_fallthru
      _
    %p186 = scmp.le.s32.totalorder 1, %s11
    %p187 = scmp.lt.s32.totalorder %s11, 3
    %p188 = pnand %p186, %p187
    %p189 = pneg %p188
    // Predicated region
    $region37: #{squeeze_excitation.1} parent=5 // pred_check
      _
    $region38: #{squeeze_excitation.1} parent=5 // pred_check_branch
      %191 = sbr.rel (%p188) target = $region40
    $region39: #{squeeze_excitation.1} parent=5 // pred_region
      %s192 = ssub.s32 %s11, 1
      %p193 = scmp.lt.s32.totalorder %s16, 1
      %s194 = scalar_select %p193, %s16, 1
      %s195 = smul.addr %s194, 2
      %s196 = smul.addr %s195, 4
      %s197 = scalar_lea.vmem %s0, %s196
      %p198 = pneg %p37
      %p199 = pneg %p34
      %p200 = pneg %p58
      %p201 = pneg %p55
      %p202 = pneg %p79
      %p203 = pneg %p76
      %p204 = pneg %p100
      %p205 = pneg %p97
      %p206 = pneg %p121
      %p207 = pneg %p118
      %p208 = pneg %p147
      %p209 = pneg %p144
      %p210 = scmp.lt.s32.totalorder %s16, 1
      %s211 = scalar_select %p210, %s16, 1
      %s212 = smul.addr %s211, 2
      %s213 = smul.addr %s212, 4
      %s214 = scalar_lea.vmem %s5, %s213
      %p215 = scmp.lt.s32.totalorder %s16, 1
      %s216 = scalar_select %p215, %s16, 1
      %s217 = smul.addr %s216, 2
      %s218 = smul.addr %s217, 4
      %s219 = scalar_lea.vmem %s0, %s218
      %p220 = scmp.lt.s32.totalorder %s16, 1
      %s221 = scalar_select %p220, %s16, 1
      %s222 = smul.addr %s221, 2
      %s223 = smul.addr %s222, 4
      %s224 = scalar_lea.vmem %s5, %s223
      %v225 = vld [vmem:[%s219] sm:$0xff]
      %v227 = vcombine.high %v225, %v225
      %vm229 = vcmask 1043456
      %v230 = vsel %vm229, %v225, 0.0
      %v231 = vsel %vm229, %v227, 0.0
      %v232 = vadd.f32 %v230, %v231
      %233 = vadd.xlane.f32.xlu0 %v232
      %v234 = vpop.xlane.xlu0 %233
      %v235 = vmul.f32 %v234, 0.00390625
      %v236 = vld [vmem:[%s1] sm:$0xf]
      %v237 = vmul.f32 %v236, %v235
      %vm238 = vcmask 60416
      %v239 = vsel %vm238, %v237, 0.0
      %v240 = vrot.slane %v239, 4
      %v241 = vadd.f32 %v239, %v240
      %v242 = vrot.slane %v241, 2
      %v243 = vadd.f32 %v241, %v242
      %v244 = vrot.slane %v243, 1
      %v245 = vadd.f32 %v243, %v244
      %v246 = vld [vmem:[%s2] sm:$0x1]
      %v247 = vadd.f32 %v245, %v246
      %v248 = vmax.f32 %v247, 0.0
      %v249 = vld [vmem:[%s3] sm:$0xf]
      %v250 = vlaneseq
      %v251 = vshrl.u32 %v250, 7
      %v252 = vsub.s32 0, %v251
      %v253 = vrot.slane %v248, %v252
      %v254 = vmul.f32 %v249, %v253
      %v255 = vsel %vm238, %v254, 0.0
      %256 = vadd.xlane.f32.xlu0 %v255
      %v257 = vpop.xlane.xlu0 %256
      %v258 = vld [vmem:[%s4] sm:$0xf]
      %v259 = vadd.f32 %v257, %v258
      %v260 = vadd.f32 %v259, 3.0
      %v261 = vmul.f32 %v260, 0.16666667
      %v262 = vmax.f32 %v261, 0.0
      %v263 = vmin.f32 %v262, 1.0
      %265 = vset.pattern.permute.xlu0 0
      %266 = vperm.xlu0 %265, %v263
      %v267 = vpop.permute.xlu0 %266
      %v269 = vmul.f32 %v267, %v225
      %v270 = vmul.f32 %v267, %v227
      %v273 = vcombine.low %v269, %v270
      %275 = vst [vmem:[%s224] sm:$0xff] %v273
      %p276 = scmp.lt.s32.totalorder %s16, 1
      %s277 = scalar_select %p276, %s16, 1
      %s278 = smul.addr %s277, 2
      %s279 = smul.addr %s278, 4
      %s280 = scalar_lea.vmem %s5, %s279
      // Predicated region
      $region41: #{squeeze_excitation.1} parent=39 // pred_check
        %p281 = pneg %p144
      $region42: #{squeeze_excitation.1} parent=39 // pred_check_branch
        %283 = sbr.rel (%p281) target = $region44
      $region43: #{squeeze_excitation.1} parent=39 // pred_region
        _
      $region44: #{squeeze_excitation.1} parent=39 // pred_fallthru
        _
    $region40: #{squeeze_excitation.1} parent=5 // pred_fallthru
      _
    %p284 = scmp.le.s32.totalorder 2, %s11
    // Predicated region
    $region45: #{squeeze_excitation.1} parent=5 // pred_check
      %p285 = pneg %p284
    $region46: #{squeeze_excitation.1} parent=5 // pred_check_branch
      %287 = sbr.rel (%p285) target = $region48
    $region47: #{squeeze_excitation.1} parent=5 // pred_region
      %s288 = ssub.s32 %s11, 2
      // Predicated region
      $region49: #{squeeze_excitation.1} parent=47 // pred_check
        %p289 = pneg %p150
      $region50: #{squeeze_excitation.1} parent=47 // pred_check_branch
        %291 = sbr.rel (%p289) target = $region52
      $region51: #{squeeze_excitation.1} parent=47 // pred_region
        %p292 = scmp.lt.s32.totalorder %s17, 1
        %s293 = scalar_select %p292, %s17, 1
        %s294 = smul.addr %s293, 2
        %s295 = smul.addr %s294, 4
        %s296 = scalar_lea.vmem %s5, %s295
      $region52: #{squeeze_excitation.1} parent=47 // pred_fallthru
        _
    $region48: #{squeeze_excitation.1} parent=5 // pred_fallthru
      _
  $region6: #{squeeze_excitation.1} parent=0 // loop_footer
    %s15 = sadd.s32 1, %s11
  $region7: #{squeeze_excitation.1} parent=0 // loop_footer_branch
    %10 = sbr.rel target = $region3
  $region8: #{squeeze_excitation.1} parent=0 // loop_exit
    _

</llo_original>
